<compile_context>
chip_gen: v7x
topology: tpu7x:2x2x1
jax: 0.10.0
libtpu: 0.0.40
codegen_flags: <defaults>
</compile_context>

<pallas_src>
import functools

import jax
import jax.numpy as jnp
from jax.experimental import pallas as pl
from jax.experimental.pallas import tpu as pltpu


def _mask_and_mean_kernel(seq_len, last_blk_ref, len_ref, x_ref, o_ref, acc_ref):
    """Masked sum over the time axis with a resident f32 accumulator.

    seq_len:      static int, full time extent L (clamps lengths for the mask).
    last_blk_ref: SMEM int32[(num_bb,)]  last time-block index holding any valid
                  frame per batch block (scalar-prefetched; also clamps the
                  input index_map so padded tiles skip DMA).
    len_ref:      VMEM int32[(TB, 1, 1)] per-row valid lengths (unclamped).
    x_ref:        VMEM [(TB, TL, H)]     one (batch-block, time-tile) slab.
    o_ref:        VMEM [(TB, 1, H)]      masked mean per row.
    acc_ref:      VMEM f32[(TB, 1, H)]   running sum across the time grid axis.
    """
    bb = pl.program_id(0)
    k = pl.program_id(1)
    tl = x_ref.shape[1]

    @pl.when(k == 0)
    def _init():
        acc_ref[...] = jnp.zeros_like(acc_ref)

    n = len_ref[...]                                             # (TB, 1, 1) int32

    # Skip the VALU/XLU work for tiles that are entirely padding for every row
    # of this batch block (their DMA is already skipped by the index_map clamp).
    @pl.when(k <= last_blk_ref[bb])
    def _accumulate():
        # Valid frames remaining in this tile, per row.  Clamping to seq_len
        # keeps OOB garbage in a partial boundary tile (and lengths > L) out of
        # the sum; the divide below still uses the unclamped length, matching
        # the PyTorch semantics exactly.
        rem = jnp.minimum(n, seq_len) - k * tl                   # (TB, 1, 1)
        t = jax.lax.broadcasted_iota(jnp.int32, (1, tl, 1), 1)   # loop-invariant
        x = x_ref[...].astype(jnp.float32)                       # (TB, TL, H)
        masked = jnp.where(t < rem, x, 0.0)                      # select, not mul
        acc_ref[...] += jnp.sum(masked, axis=1, keepdims=True)   # (TB, 1, H)

    @pl.when(k == pl.num_programs(1) - 1)
    def _finalize():
        # Exact divide: it executes only once per batch row, so exactness is
        # free.  n == 0 yields inf/nan, matching PyTorch's division semantics.
        o_ref[...] = (acc_ref[...] / n.astype(jnp.float32)).astype(o_ref.dtype)


def mask_and_mean(convd_speech, chunk_timestep_len, max_pad=None, *,
                  batch_tile=None, time_tile=None):
    """Masked mean over the time axis (Mask_and_Mean.forward).

    convd_speech:       (B, L, H) float array (f32 or bf16).
    chunk_timestep_len: (B,) or (B, 1) integer per-batch valid lengths.
    max_pad:            accepted but unused (as in the PyTorch module).
    batch_tile/time_tile: optional tiling overrides (for tests/benchmarks).
    """
    del max_pad  # unused, as in the PyTorch module
    B, L, H = convd_speech.shape
    dtype = convd_speech.dtype
    itemsize = jnp.dtype(dtype).itemsize
    lens = jnp.asarray(chunk_timestep_len, dtype=jnp.int32).reshape(B)

    # Per-input-buffer tile cap.  4 MiB double-buffered (8 MiB) + scratch stays
    # inside v5e's 16 MiB default scoped VMEM, and is within the recommended
    # 2-4 MiB (v6e) / 4-8 MiB (v7x) range, making DMA time >> step overhead.
    cap = 4 << 20
    # Sublane packing multiple for the time dim: 8 (f32), 16 (bf16), 32 (int8).
    sub = max(8, 32 // itemsize)
    row_bytes = L * H * itemsize

    # Batch tile: pack several rows per grid step when a single (L, H) row is
    # small, amortizing the ~0.35 us per-step overhead and batching the store.
    if batch_tile is not None:
        tb = max(1, min(B, int(batch_tile)))
    elif B > 1 and 2 * row_bytes <= cap:
        tb = max(1, min(B, cap // max(1, row_bytes)))
    else:
        tb = 1

    # Time tile: largest sublane-aligned tile fitting the per-buffer cap.
    if time_tile is not None:
        tl = max(1, min(L, int(time_tile)))
    elif tb > 1:
        tl = L
    else:
        tl = max(sub, min(L, cap // max(1, tb * H * itemsize)))
    if tl < L:
        tl = max(sub, (tl // sub) * sub)
    else:
        tl = L

    num_bb = pl.cdiv(B, tb)
    num_k = pl.cdiv(L, tl)
    b_pad = num_bb * tb

    # Host-side scalar plumbing (tiny arrays).
    lens_clamped = jnp.minimum(lens, L)
    lens_grp = jnp.pad(lens_clamped, (0, b_pad - B)).reshape(num_bb, tb)
    # Last time-block index containing any valid frame, per batch block.
    last_blk = (jnp.maximum(jnp.max(lens_grp, axis=1) - 1, 0) // tl).astype(jnp.int32)
    # Per-row (unclamped) lengths; padded rows get 0 so their mask is all-false
    # and boundary-block garbage can never enter the sums.
    lens3d = jnp.pad(lens, (0, b_pad - B)).reshape(b_pad, 1, 1)

    kernel = functools.partial(_mask_and_mean_kernel, L)

    cost = pl.CostEstimate(
        flops=2 * B * L * H,
        transcendentals=0,
        bytes_accessed=B * L * H * itemsize + B * H * itemsize + (B + num_bb) * 4,
    )

    out = pl.pallas_call(
        kernel,
        out_shape=jax.ShapeDtypeStruct((b_pad, 1, H), dtype),
        grid_spec=pltpu.PrefetchScalarGridSpec(
            num_scalar_prefetch=1,
            grid=(num_bb, num_k),
            in_specs=[
                # Per-row lengths: block index constant along k -> fetched once
                # per batch block.
                pl.BlockSpec((tb, 1, 1), lambda bb, k, lb: (bb, 0, 0)),
                # Data slab; clamp the time-block index so fully padded tiles
                # re-reference the previous block and Pallas skips their DMA.
                pl.BlockSpec(
                    (tb, tl, H),
                    lambda bb, k, lb: (bb, jnp.minimum(k, lb[bb]), 0),
                ),
            ],
            out_specs=pl.BlockSpec((tb, 1, H), lambda bb, k, lb: (bb, 0, 0)),
            scratch_shapes=[pltpu.VMEM((tb, 1, H), jnp.float32)],
        ),
        compiler_params=pltpu.CompilerParams(
            dimension_semantics=("parallel", "arbitrary"),
        ),
        cost_estimate=cost,
    )(last_blk, lens3d, convd_speech)

    return out[:B].reshape(B, H)


def _reference(x, lens):
    """Pure-JAX reference with PyTorch Mask_and_Mean semantics."""
    B, L, H = x.shape
    t = jnp.arange(L)[None, :, None]
    mask = t < lens.reshape(B, 1, 1)
    summed = (x.astype(jnp.float32) * mask).sum(axis=1)
    return summed / lens.reshape(B, 1).astype(jnp.float32)


if __name__ == "__main__":
    key1, key3 = jax.random.split(jax.random.PRNGKey(0))

    # Case 1: default heuristics -> multi-row blocking (TB = B, one time tile).
    B, L, H = 2, 40, 128
    x1 = jax.random.normal(key1, (B, L, H), dtype=jnp.float32)
    lens1 = jnp.array([[37], [20]], dtype=jnp.int32)       # (B, 1) like PyTorch
    out1 = jax.block_until_ready(mask_and_mean(x1, lens1, max_pad=L))
    ref1 = _reference(x1, jnp.asarray(lens1).reshape(B))
    assert out1.shape == (B, H)
    assert jnp.allclose(out1, ref1, atol=1e-4, rtol=1e-4), float(
        jnp.max(jnp.abs(out1 - ref1)))

    # Case 2: forced time tiling -> exercises the resident accumulator across
    # the "arbitrary" time axis, a partial boundary time tile, and the
    # padded-tail DMA/compute skip (row 1, len 20, never touches tile k=2).
    out2 = jax.block_until_ready(
        mask_and_mean(x1, lens1, max_pad=L, batch_tile=1, time_tile=16))
    assert jnp.allclose(out2, ref1, atol=1e-4, rtol=1e-4), float(
        jnp.max(jnp.abs(out2 - ref1)))

    # Case 3: bf16, one length larger than L (mask-clamp path), B not a
    # multiple of the batch tile (partial boundary batch block), and a partial
    # boundary time tile.
    B3, L3, H3 = 3, 24, 256
    x3 = jax.random.normal(key3, (B3, L3, H3)).astype(jnp.bfloat16)
    lens3 = jnp.array([30, 24, 7], dtype=jnp.int32)
    out3 = jax.block_until_ready(
        mask_and_mean(x3, lens3, max_pad=L3, batch_tile=2, time_tile=16))
    ref3 = _reference(x3, lens3)
    assert out3.shape == (B3, H3)
    assert jnp.allclose(out3.astype(jnp.float32), ref3, atol=2e-2, rtol=2e-2), float(
        jnp.max(jnp.abs(out3.astype(jnp.float32) - ref3)))

    print("KERNEL_OK")
</pallas_src>

<mosaic_0001>
module attributes {stable_mosaic.version = 11 : i64} {
  func.func @_mask_and_mean_kernel(%arg0: i32, %arg1: i32, %arg2: memref<1xi32, #tpu.memory_space<smem>>, %arg3: memref<2x1x1xi32, #tpu.memory_space<vmem>>, %arg4: memref<2x40x128xf32, #tpu.memory_space<vmem>>, %arg5: memref<2x1x128xf32, #tpu.memory_space<vmem>>, %arg6: memref<2x1x128xf32, #tpu.memory_space<vmem>>) attributes {dimension_semantics = [#tpu.dimension_semantics<parallel>, #tpu.dimension_semantics<arbitrary>], iteration_bounds = array<i64: 1, 1>, scalar_prefetch = 1 : i64, scratch_operands = 1 : i64, tpu.core_type = #tpu.core_type<tc>, window_params = [{transform_indices = @transform_0, window_bounds = array<i64: 2, 1, 1>}, {transform_indices = @transform_1, window_bounds = array<i64: 2, 40, 128>}, {transform_indices = @transform_2, window_bounds = array<i64: 2, 1, 128>}]} {
    %c0_i32 = arith.constant 0 : i32
    %0 = arith.cmpi eq, %arg1, %c0_i32 : i32
    %1 = arith.extui %0 : i1 to i32
    %c0_i32_0 = arith.constant 0 : i32
    %2 = arith.cmpi ne, %1, %c0_i32_0 : i32
    scf.if %2 {
      %cst = arith.constant 0.000000e+00 : f32
      %12 = vector.broadcast %cst : f32 to vector<2x1x128xf32>
      %c0_6 = arith.constant 0 : index
      %c0_7 = arith.constant 0 : index
      %c0_8 = arith.constant 0 : index
      %13 = vector.load %arg6[%c0_6, %c0_7, %c0_8] : memref<2x1x128xf32, #tpu.memory_space<vmem>>, vector<2x1x128xf32>
      tpu.vector_store %arg6[%c0_6, %c0_7, %c0_8], %12 {strides = array<i32>} : memref<2x1x128xf32, #tpu.memory_space<vmem>>, vector<2x1x128xf32>,
    } else {
    }
    %c0 = arith.constant 0 : index
    %c0_1 = arith.constant 0 : index
    %c0_2 = arith.constant 0 : index
    %3 = vector.load %arg3[%c0, %c0_1, %c0_2] : memref<2x1x1xi32, #tpu.memory_space<vmem>>, vector<2x1x1xi32>
    %4 = arith.index_cast %arg0 : i32 to index
    %5 = memref.load %arg2[%4] : memref<1xi32, #tpu.memory_space<smem>>
    %6 = arith.cmpi sle, %arg1, %5 : i32
    %7 = arith.extui %6 : i1 to i32
    %c0_i32_3 = arith.constant 0 : i32
    %8 = arith.cmpi ne, %7, %c0_i32_3 : i32
    scf.if %8 {
      %c40_i32 = arith.constant 40 : i32
      %12 = vector.broadcast %c40_i32 : i32 to vector<2x1x1xi32>
      %13 = arith.minsi %3, %12 : vector<2x1x1xi32>
      %c40_i32_6 = arith.constant 40 : i32
      %14 = arith.muli %arg1, %c40_i32_6 : i32
      %15 = vector.broadcast %14 : i32 to vector<2x1x1xi32>
      %16 = arith.subi %13, %15 : vector<2x1x1xi32>
      %17 = tpu.iota {dimensions = array<i32: 1>} : vector<1x40x1xi32>
      %c0_7 = arith.constant 0 : index
      %c0_8 = arith.constant 0 : index
      %c0_9 = arith.constant 0 : index
      %18 = vector.load %arg4[%c0_7, %c0_8, %c0_9] : memref<2x40x128xf32, #tpu.memory_space<vmem>>, vector<2x40x128xf32>
      %19 = vector.broadcast %17 : vector<1x40x1xi32> to vector<2x40x1xi32>
      %20 = vector.broadcast %16 : vector<2x1x1xi32> to vector<2x40x1xi32>
      %21 = arith.cmpi slt, %19, %20 : vector<2x40x1xi32>
      %cst = arith.constant 0.000000e+00 : f32
      %22 = vector.shape_cast %21 : vector<2x40x1xi1> to vector<2x40x1xi1>
      %23 = vector.broadcast %22 : vector<2x40x1xi1> to vector<2x40x128xi1>
      %24 = vector.broadcast %cst : f32 to vector<2x40x128xf32>
      %25 = arith.select %23, %18, %24 : vector<2x40x128xi1>, vector<2x40x128xf32>
      %c0_10 = arith.constant 0 : index
      %c0_11 = arith.constant 0 : index
      %c0_12 = arith.constant 0 : index
      %26 = vector.load %arg6[%c0_10, %c0_11, %c0_12] : memref<2x1x128xf32, #tpu.memory_space<vmem>>, vector<2x1x128xf32>
      %cst_13 = arith.constant dense<0.000000e+00> : vector<2x128xf32>
      %27 = vector.multi_reduction <add>, %25, %cst_13 [1] : vector<2x40x128xf32> to vector<2x128xf32>
      %28 = vector.shape_cast %27 : vector<2x128xf32> to vector<2x1x128xf32>
      %29 = arith.addf %26, %28 : vector<2x1x128xf32>
      %c0_14 = arith.constant 0 : index
      %c0_15 = arith.constant 0 : index
      %c0_16 = arith.constant 0 : index
      %30 = vector.load %arg6[%c0_14, %c0_15, %c0_16] : memref<2x1x128xf32, #tpu.memory_space<vmem>>, vector<2x1x128xf32>
      tpu.vector_store %arg6[%c0_14, %c0_15, %c0_16], %29 {strides = array<i32>} : memref<2x1x128xf32, #tpu.memory_space<vmem>>, vector<2x1x128xf32>,
    } else {
    }
    %c0_i32_4 = arith.constant 0 : i32
    %9 = arith.cmpi eq, %arg1, %c0_i32_4 : i32
    %10 = arith.extui %9 : i1 to i32
    %c0_i32_5 = arith.constant 0 : i32
    %11 = arith.cmpi ne, %10, %c0_i32_5 : i32
    scf.if %11 {
      %c0_6 = arith.constant 0 : index
      %c0_7 = arith.constant 0 : index
      %c0_8 = arith.constant 0 : index
      %12 = vector.load %arg6[%c0_6, %c0_7, %c0_8] : memref<2x1x128xf32, #tpu.memory_space<vmem>>, vector<2x1x128xf32>
      %13 = arith.sitofp %3 : vector<2x1x1xi32> to vector<2x1x1xf32>
      %14 = vector.broadcast %13 : vector<2x1x1xf32> to vector<2x1x128xf32>
      %15 = arith.divf %12, %14 : vector<2x1x128xf32>
      %c0_9 = arith.constant 0 : index
      %c0_10 = arith.constant 0 : index
      %c0_11 = arith.constant 0 : index
      %16 = vector.load %arg5[%c0_9, %c0_10, %c0_11] : memref<2x1x128xf32, #tpu.memory_space<vmem>>, vector<2x1x128xf32>
      tpu.vector_store %arg5[%c0_9, %c0_10, %c0_11], %15 {strides = array<i32>} : memref<2x1x128xf32, #tpu.memory_space<vmem>>, vector<2x1x128xf32>,
    } else {
    }
    return
  }
  func.func @transform_0(%arg0: i32, %arg1: i32, %arg2: memref<1xi32, #tpu.memory_space<smem>>) -> (i32, i32, i32) {
    %c0_i32 = arith.constant 0 : i32
    %c0_i32_0 = arith.constant 0 : i32
    %c0_i32_1 = arith.constant 0 : i32
    return %arg0, %c0_i32, %c0_i32_0 : i32, i32, i32
  }
  func.func @transform_1(%arg0: i32, %arg1: i32, %arg2: memref<1xi32, #tpu.memory_space<smem>>) -> (i32, i32, i32) {
    %0 = arith.index_cast %arg0 : i32 to index
    %1 = memref.load %arg2[%0] : memref<1xi32, #tpu.memory_space<smem>>
    %2 = arith.minsi %arg1, %1 : i32
    %c0_i32 = arith.constant 0 : i32
    %c0_i32_0 = arith.constant 0 : i32
    return %arg0, %2, %c0_i32 : i32, i32, i32
  }
  func.func @transform_2(%arg0: i32, %arg1: i32, %arg2: memref<1xi32, #tpu.memory_space<smem>>) -> (i32, i32, i32) {
    %c0_i32 = arith.constant 0 : i32
    %c0_i32_0 = arith.constant 0 : i32
    %c0_i32_1 = arith.constant 0 : i32
    return %arg0, %c0_i32, %c0_i32_0 : i32, i32, i32
  }
}

</mosaic_0001>

<llo_original>
// kernel: tpu_custom_call.1
$region0: #{tpu_custom_call.1}
  #allocation0 [shape = 'u32[]', space=smem, size = 0x4, offset = 0x4, fixed_abs, tag = 'smem constant byte address 0x4 - core index']
  #allocation1 [shape = 'u32[144,128]{1,0:T(1,128)}', space=vmem, size = 0x12000, scoped, tag = 'internal scratch']
  #allocation2 [shape = 'f32[2,1,128]{2,1,0:T(1,128)}', space=vmem, size = 0x400, scoped, tag = 'scratch operand']
  #allocation3 [shape = 's32[1]{0}', space=sflag, size = 0x4, scoped, tag = 'scoped memory for tpu_custom_call.1']
  #allocation4 [shape = 's32[1]{0:T(128)S(6)}', space=smem, size = 0x200, scoped, tag = 'prefetched SMEM operand 0']
  %s0 = inlined_call_operand.<no memory space> [shape: s32[1], index: 0, kind: input, shape index: {}]
  %s1 = inlined_call_operand.vmem [shape: s32[2,1,1], index: 1, kind: input, shape index: {}]
  %s2 = inlined_call_operand.hbm [shape: f32[2,40,128], index: 2, kind: input, shape index: {}]
  %s3 = inlined_call_operand.hbm [shape: f32[2,1,128], index: 3, kind: output, shape index: {}]
  %s4 = sld [smem:[#allocation0]]
  $region34: #{tpu_custom_call.1} parent=0
    _
  %s6 = ssub.s32 1, %s4
  %s7 = scalar_select 0, %s6, %s4
  %8 = sst [smem:[#allocation4]] %s0
  $region1: #{tpu_custom_call.1} parent=0
    #allocation5 [shape = 'u8[40960]{0}', space=vmem, size = 0xa000, scoped, tag = 'input window, operand 2, single buffered']
    #allocation6 [shape = 's32[1]{0}', space=sflag, size = 0x4, scoped, tag = 'scoped memory for tpu_custom_call.1']
    #allocation7 [shape = 's32[1]{0}', space=sflag, size = 0x4, scoped, tag = 'scoped memory for tpu_custom_call.1']
    #allocation8 [shape = 'u8[1024]{0}', space=vmem, size = 0x400, scoped, tag = 'output window, operand 0, single buffered']
    %9 = vsyncpa [#allocation6], 0
    %10 = vsyncpa [#allocation7], 0
    // Predicated region
    $region2: #{tpu_custom_call.1} parent=1 // pred_check
      _
    $region3: #{tpu_custom_call.1} parent=1 // pred_check_branch
      %12 = sbr.rel (0) target = $region5
    $region4: #{tpu_custom_call.1} parent=1 // pred_region
      _
    $region5: #{tpu_custom_call.1} parent=1 // pred_fallthru
      _
    // Predicated region
    $region6: #{tpu_custom_call.1} parent=1 // pred_check
      _
    $region7: #{tpu_custom_call.1} parent=1 // pred_check_branch
      %14 = sbr.rel (0) target = $region9
    $region8: #{tpu_custom_call.1} parent=1 // pred_region
      %s15 = sld [smem:[#allocation4]]
      %p16 = scmp.lt.s32.totalorder 0, %s15
      %s17 = scalar_select %p16, 0, %s15
      %s18 = smul.u32 5, %s17
      %s20 = ssub.s32 1280, 1280
      %21 = vsyncadd [#allocation6], %s20
      %s22 = smul.addr %s18, 128
      %s23 = scalar_lea.hbm %s2, %s22
      %s24 = sshll.u32 [#allocation5], 4
      %s25 = int_to_ptr.vmem [resolvable:$true] %s24
      %30 = dma.hbm_to_vmem [thread:$0]  %s23, 1280, %s25, [#allocation6], 128, 128, 8
    $region9: #{tpu_custom_call.1} parent=1 // pred_fallthru
      _
    // Predicated region
    $region10: #{tpu_custom_call.1} parent=1 // pred_check
      _
    $region11: #{tpu_custom_call.1} parent=1 // pred_check_branch
      %32 = sbr.rel (0) target = $region13
    $region12: #{tpu_custom_call.1} parent=1 // pred_region
      %33 = dma.done [#allocation6], 1280
    $region13: #{tpu_custom_call.1} parent=1 // pred_fallthru
      _
    %s34 = sld [smem:[#allocation4]]
    %p35 = scmp.lt.s32.totalorder 0, %s34
    %s36 = scalar_select %p35, 0, %s34
    %s37 = smul.u32 5, %s36
    %p38 = scmp.eq.s32.totalorder 0, 0
    // Predicated region
    $region14: #{tpu_custom_call.1} parent=1 // pred_check
      %p39 = pneg %p38
    $region15: #{tpu_custom_call.1} parent=1 // pred_check_branch
      %41 = sbr.rel (%p39) target = $region17
    $region16: #{tpu_custom_call.1} parent=1 // pred_region
      %42 = vst [vmem:[#allocation2] sm:$0x1] 0.0
      %43 = vst [vmem:[#allocation2 + $0x1] sm:$0x1] 0.0
    $region17: #{tpu_custom_call.1} parent=1 // pred_fallthru
      _
    %v44 = vld [vmem:[%s1] sm:$0x1]
    %v45 = vld [vmem:[%s1 + $0x1] sm:$0x1]
    %s46 = sld [smem:[#allocation4]]
    %p47 = scmp.le.s32.totalorder 0, %s46
    // Predicated region
    $region18: #{tpu_custom_call.1} parent=1 // pred_check
      %p48 = pneg %p47
    $region19: #{tpu_custom_call.1} parent=1 // pred_check_branch
      %50 = sbr.rel (%p48) target = $region21
    $region20: #{tpu_custom_call.1} parent=1 // pred_region
      %vm51 = vcmp.lt.s32.totalorder %v44, 40
      %v52 = vsel %vm51, %v44, 40
      %vm53 = vcmp.lt.s32.totalorder %v45, 40
      %v54 = vsel %vm53, %v45, 40
      %s55 = smul.u32 0, 40
      %v56 = vstv %s55
      %v57 = vsub.s32 %v52, %v56
      %v58 = vsub.s32 %v54, %v56
      %v59 = vlaneseq
      %v60 = vshrl.u32 %v59, 7
      %v61 = vadd.s32 %v60, 8
      %v62 = vadd.s32 %v60, 16
      %v63 = vadd.s32 %v60, 24
      %v64 = vadd.s32 %v60, 32
      %v65 = vld [vmem:[#allocation5] sm:$0xff]
      %v66 = vld [vmem:[#allocation5 + $0x8] sm:$0xff]
      %v67 = vld [vmem:[#allocation5 + $0x10] sm:$0xff]
      %v68 = vld [vmem:[#allocation5 + $0x18] sm:$0xff]
      %v69 = vld [vmem:[#allocation5 + $0x20] sm:$0xff]
      %v70 = vld [vmem:[#allocation5 + $0x28] sm:$0xff]
      %v71 = vld [vmem:[#allocation5 + $0x30] sm:$0xff]
      %v72 = vld [vmem:[#allocation5 + $0x38] sm:$0xff]
      %v73 = vld [vmem:[#allocation5 + $0x40] sm:$0xff]
      %v74 = vld [vmem:[#allocation5 + $0x48] sm:$0xff]
      %v75 = vlaneseq
      %v76 = vshrl.u32 %v75, 7
      %v77 = vsub.s32 0, %v76
      %v78 = vrot.slane %v57, %v77
      %v79 = vlaneseq
      %v80 = vshrl.u32 %v79, 7
      %v81 = vsub.s32 0, %v80
      %v82 = vrot.slane %v58, %v81
      %vm83 = vcmp.lt.s32.totalorder %v60, %v78
      %vm84 = vcmp.lt.s32.totalorder %v61, %v78
      %vm85 = vcmp.lt.s32.totalorder %v62, %v78
      %vm86 = vcmp.lt.s32.totalorder %v63, %v78
      %vm87 = vcmp.lt.s32.totalorder %v64, %v78
      %vm88 = vcmp.lt.s32.totalorder %v60, %v82
      %vm89 = vcmp.lt.s32.totalorder %v61, %v82
      %vm90 = vcmp.lt.s32.totalorder %v62, %v82
      %vm91 = vcmp.lt.s32.totalorder %v63, %v82
      %vm92 = vcmp.lt.s32.totalorder %v64, %v82
      %v93 = vsel %vm83, 1, 0
      %v94 = vsel %vm84, 1, 0
      %v95 = vsel %vm85, 1, 0
      %v96 = vsel %vm86, 1, 0
      %v97 = vsel %vm87, 1, 0
      %v98 = vsel %vm88, 1, 0
      %v99 = vsel %vm89, 1, 0
      %v100 = vsel %vm90, 1, 0
      %v101 = vsel %vm91, 1, 0
      %v102 = vsel %vm92, 1, 0
      %103 = vset.pattern.permute.xlu0 0
      %104 = vperm.xlu0 %103, %v93
      %v105 = vpop.permute.xlu0 %104
      %106 = vset.pattern.permute.xlu0 0
      %107 = vperm.xlu0 %106, %v94
      %v108 = vpop.permute.xlu0 %107
      %109 = vset.pattern.permute.xlu0 0
      %110 = vperm.xlu0 %109, %v95
      %v111 = vpop.permute.xlu0 %110
      %112 = vset.pattern.permute.xlu0 0
      %113 = vperm.xlu0 %112, %v96
      %v114 = vpop.permute.xlu0 %113
      %115 = vset.pattern.permute.xlu0 0
      %116 = vperm.xlu0 %115, %v97
      %v117 = vpop.permute.xlu0 %116
      %118 = vset.pattern.permute.xlu0 0
      %119 = vperm.xlu0 %118, %v98
      %v120 = vpop.permute.xlu0 %119
      %121 = vset.pattern.permute.xlu0 0
      %122 = vperm.xlu0 %121, %v99
      %v123 = vpop.permute.xlu0 %122
      %124 = vset.pattern.permute.xlu0 0
      %125 = vperm.xlu0 %124, %v100
      %v126 = vpop.permute.xlu0 %125
      %127 = vset.pattern.permute.xlu0 0
      %128 = vperm.xlu0 %127, %v101
      %v129 = vpop.permute.xlu0 %128
      %130 = vset.pattern.permute.xlu0 0
      %131 = vperm.xlu0 %130, %v102
      %v132 = vpop.permute.xlu0 %131
      %vm133 = vcmp.eq.s32.totalorder %v105, 1
      %vm134 = vcmp.eq.s32.totalorder %v108, 1
      %vm135 = vcmp.eq.s32.totalorder %v111, 1
      %vm136 = vcmp.eq.s32.totalorder %v114, 1
      %vm137 = vcmp.eq.s32.totalorder %v117, 1
      %vm138 = vcmp.eq.s32.totalorder %v120, 1
      %vm139 = vcmp.eq.s32.totalorder %v123, 1
      %vm140 = vcmp.eq.s32.totalorder %v126, 1
      %vm141 = vcmp.eq.s32.totalorder %v129, 1
      %vm142 = vcmp.eq.s32.totalorder %v132, 1
      %v143 = vsel %vm133, %v65, 0.0
      %v144 = vsel %vm134, %v66, 0.0
      %v145 = vsel %vm135, %v67, 0.0
      %v146 = vsel %vm136, %v68, 0.0
      %v147 = vsel %vm137, %v69, 0.0
      %v148 = vsel %vm138, %v70, 0.0
      %v149 = vsel %vm139, %v71, 0.0
      %v150 = vsel %vm140, %v72, 0.0
      %v151 = vsel %vm141, %v73, 0.0
      %v152 = vsel %vm142, %v74, 0.0
      %v153 = vld [vmem:[#allocation2] sm:$0x1]
      %v154 = vld [vmem:[#allocation2 + $0x1] sm:$0x1]
      %v155 = vadd.f32 %v143, %v144
      %v156 = vadd.f32 %v155, %v145
      %v157 = vadd.f32 %v156, %v146
      %v158 = vadd.f32 %v157, %v147
      %v159 = vrot.slane %v158, 4
      %v160 = vadd.f32 %v158, %v159
      %v161 = vrot.slane %v160, 2
      %v162 = vadd.f32 %v160, %v161
      %v163 = vrot.slane %v162, 1
      %v164 = vadd.f32 %v162, %v163
      %v165 = vadd.f32 %v148, %v149
      %v166 = vadd.f32 %v165, %v150
      %v167 = vadd.f32 %v166, %v151
      %v168 = vadd.f32 %v167, %v152
      %v169 = vrot.slane %v168, 4
      %v170 = vadd.f32 %v168, %v169
      %v171 = vrot.slane %v170, 2
      %v172 = vadd.f32 %v170, %v171
      %v173 = vrot.slane %v172, 1
      %v174 = vadd.f32 %v172, %v173
      %v175 = vadd.f32 %v153, %v164
      %v176 = vadd.f32 %v154, %v174
      %177 = vst [vmem:[#allocation2] sm:$0x1] %v175
      %178 = vst [vmem:[#allocation2 + $0x1] sm:$0x1] %v176
    $region21: #{tpu_custom_call.1} parent=1 // pred_fallthru
      _
    // Predicated region
    $region22: #{tpu_custom_call.1} parent=1 // pred_check
      %p179 = pneg %p38
    $region23: #{tpu_custom_call.1} parent=1 // pred_check_branch
      %181 = sbr.rel (%p179) target = $region25
    $region24: #{tpu_custom_call.1} parent=1 // pred_region
      %v182 = vld [vmem:[#allocation2] sm:$0x1]
      %v183 = vld [vmem:[#allocation2 + $0x1] sm:$0x1]
      %v184 = vcvt.s32.f32 %v44
      %v185 = vcvt.s32.f32 %v45
      %187 = vset.pattern.permute.xlu0 0
      %188 = vperm.xlu0 %187, %v184
      %v189 = vpop.permute.xlu0 %188
      %v191 = vlaneseq
      %v192 = vshrl.u32 %v191, 7
      %v193 = vsub.s32 0, %v192
      %v194 = vrot.slane %v189, %v193
      %196 = vset.pattern.permute.xlu0 0
      %197 = vperm.xlu0 %196, %v185
      %v198 = vpop.permute.xlu0 %197
      %v200 = vlaneseq
      %v201 = vshrl.u32 %v200, 7
      %v202 = vsub.s32 0, %v201
      %v203 = vrot.slane %v198, %v202
      %v204 = vrcp.pop %v194
      %v205 = vmul.f32 %v182, %v204
      %v206 = vrcp.pop %v203
      %v207 = vmul.f32 %v183, %v206
      %208 = vst [vmem:[#allocation8] sm:$0x1] %v205
      %209 = vst [vmem:[#allocation8 + $0x1] sm:$0x1] %v207
    $region25: #{tpu_custom_call.1} parent=1 // pred_fallthru
      _
    // Predicated region
    $region26: #{tpu_custom_call.1} parent=1 // pred_check
      _
    $region27: #{tpu_custom_call.1} parent=1 // pred_check_branch
      %211 = sbr.rel (0) target = $region29
    $region28: #{tpu_custom_call.1} parent=1 // pred_region
      %s213 = ssub.s32 32, 32
      %214 = vsyncadd [#allocation7], %s213
      %s215 = sshll.u32 [#allocation8], 4
      %s216 = int_to_ptr.vmem [resolvable:$true] %s215
      %221 = dma.vmem_to_hbm [thread:$0]  %s216, 32, %s3, [#allocation7], 16, 16, 1
    $region29: #{tpu_custom_call.1} parent=1 // pred_fallthru
      _
    // Predicated region
    $region30: #{tpu_custom_call.1} parent=1 // pred_check
      _
    $region31: #{tpu_custom_call.1} parent=1 // pred_check_branch
      %223 = sbr.rel (0) target = $region33
    $region32: #{tpu_custom_call.1} parent=1 // pred_region
      %224 = dma.done [#allocation7], 32
    $region33: #{tpu_custom_call.1} parent=1 // pred_fallthru
      _
    %225 = vsyncpa [#allocation6], 1
    %226 = vsyncpa [#allocation7], 1

</llo_original>
